<compile_context>
chip_gen: v7x
topology: tpu7x:2x2x1
jax: 0.10.0
libtpu: 0.0.40
codegen_flags: <defaults>
</compile_context>

<pallas_src>
import math

import jax
import jax.numpy as jnp
from jax import lax
from jax.experimental import pallas as pl
from jax.experimental.pallas import tpu as pltpu


# ------------------------- VMEM limit / tile helpers -------------------------

def _vmem_limit_bytes():
    """Generation-aware scoped-VMEM limit.

    96 MiB on 128-MiB chips (v5e/v6e), half of physical on 64-MiB v7x,
    conservative 48 MiB fallback if the hardware query is unavailable.
    """
    try:
        cap = getattr(pltpu.get_tpu_info(), "vmem_capacity_bytes", None)
    except Exception:
        cap = None
    if not cap:
        return 48 * 1024 * 1024
    if cap >= 100 * 1024 * 1024:          # v5e / v6e: 128 MiB physical
        return 96 * 1024 * 1024
    return max(cap // 2, 16 * 1024 * 1024)  # v7x: 64 MiB physical -> 32 MiB


_VMEM_LIMIT = _vmem_limit_bytes()


def _pick_tile(n, candidates):
    """Largest candidate tile that evenly divides n (falls back to full n)."""
    for c in candidates:
        if n % c == 0:
            return c
    return n


# --------------------- kernel 1: fused Q/K/V projection ---------------------

def _make_qkv_kernel(compute_dtype):
    def kernel(xq_ref, xk_ref, xv_ref, w_ref, b_ref, oq_ref, ok_ref, ov_ref):
        # x*_ref: (TM, D); w_ref: (3, D, D) compute-dtype, resident;
        # b_ref: (3, 1, D) f32, resident.  1/sqrt(d_k) is baked into slot 0.
        def proj(x_ref, idx, o_ref):
            x = x_ref[...].astype(compute_dtype)
            o_ref[...] = (
                jnp.dot(x, w_ref[idx], preferred_element_type=jnp.float32)
                + b_ref[idx]
            ).astype(o_ref.dtype)

        proj(xq_ref, 0, oq_ref)
        proj(xk_ref, 1, ok_ref)
        proj(xv_ref, 2, ov_ref)

    return kernel


def _make_qkv_shared_kernel(d_model, compute_dtype):
    D = d_model

    def kernel(x_ref, w_ref, b_ref, oq_ref, ok_ref, ov_ref):
        # Self-attention fast path: one (TM, D) @ (D, 3D) matmul, x DMA'd once.
        x = x_ref[...].astype(compute_dtype)
        res = jnp.dot(x, w_ref[...], preferred_element_type=jnp.float32) + b_ref[...]
        oq_ref[...] = res[:, :D].astype(oq_ref.dtype)
        ok_ref[...] = res[:, D:2 * D].astype(ok_ref.dtype)
        ov_ref[...] = res[:, 2 * D:].astype(ov_ref.dtype)

    return kernel


def pallas_qkv_proj(xq, xk, xv, w3, b3, compute_dtype, out_dtype):
    """xq/xk/xv: (M, D); w3: (3, D, D); b3: (3, 1, D) -> three (M, D) arrays."""
    M, D = xq.shape
    TM = _pick_tile(M, (512, 256, 128, 64, 32, 16, 8))
    row = pl.BlockSpec((TM, D), lambda i: (i, 0))
    out_sds = jax.ShapeDtypeStruct((M, D), out_dtype)
    return pl.pallas_call(
        _make_qkv_kernel(compute_dtype),
        out_shape=(out_sds, out_sds, out_sds),
        grid=(M // TM,),
        in_specs=[
            row, row, row,
            pl.BlockSpec((3, D, D), lambda i: (0, 0, 0)),   # weights resident
            pl.BlockSpec((3, 1, D), lambda i: (0, 0, 0)),   # biases resident
        ],
        out_specs=(row, row, row),
        compiler_params=pltpu.CompilerParams(
            dimension_semantics=("parallel",),
            vmem_limit_bytes=_VMEM_LIMIT,
        ),
    )(xq, xk, xv, w3, b3)


def pallas_qkv_proj_shared(x, w_cat, b_cat, compute_dtype, out_dtype):
    """x: (M, D); w_cat: (D, 3D); b_cat: (1, 3D) -> three (M, D) arrays."""
    M, D = x.shape
    TM = _pick_tile(M, (512, 256, 128, 64, 32, 16, 8))
    row = pl.BlockSpec((TM, D), lambda i: (i, 0))
    out_sds = jax.ShapeDtypeStruct((M, D), out_dtype)
    return pl.pallas_call(
        _make_qkv_shared_kernel(D, compute_dtype),
        out_shape=(out_sds, out_sds, out_sds),
        grid=(M // TM,),
        in_specs=[
            row,
            pl.BlockSpec((D, 3 * D), lambda i: (0, 0)),     # Wqkv resident
            pl.BlockSpec((1, 3 * D), lambda i: (0, 0)),     # bias resident
        ],
        out_specs=(row, row, row),
        compiler_params=pltpu.CompilerParams(
            dimension_semantics=("parallel",),
            vmem_limit_bytes=_VMEM_LIMIT,
        ),
    )(x, w_cat, b_cat)


# ------------- kernel 2: attention (all heads) + fused out_proj --------------

def _make_attn_kernel(n_heads, d_k, compute_dtype):
    def kernel(q_ref, k_ref, v_ref, bias_ref, wo_ref, bo_ref, o_ref):
        # q_ref: (TQ, D); k_ref/v_ref: (S, D); bias_ref: (TQ, S) f32
        # wo_ref: (D, D) compute-dtype, resident; bo_ref: (1, D) f32
        # o_ref: (TQ, D) f32
        # Slab loads/casts hoisted out of the head loop; 1/sqrt(d_k) already
        # baked into the Q projection, so no per-head scale multiply.
        q = q_ref[...].astype(compute_dtype)
        k = k_ref[...].astype(compute_dtype)
        v = v_ref[...].astype(compute_dtype)
        wo = wo_ref[...]
        bias = bias_ref[...]                 # -1e32 where mask==0, else sw / 0
        is_masked = bias < -1e31             # positions where mask == 0
        tq = q.shape[0]
        D = wo.shape[1]

        acc = jnp.zeros((tq, D), jnp.float32)   # fused out_proj accumulator

        # NOTE / TODO(synk): K/V are held full-length per step; for very long S
        # (especially v7x's 64 MiB VMEM) this should become flash-style KV
        # streaming (blocked KV grid axis + online-softmax scratch).
        for hh in range(n_heads):            # static unroll; n_heads is small
            lo = hh * d_k
            qh = q[:, lo:lo + d_k]
            kh = k[:, lo:lo + d_k]
            vh = v[:, lo:lo + d_k]

            # q @ k^T without materializing kh.T: contract the last dims.
            s = lax.dot_general(qh, kh, (((1,), (1,)), ((), ())),
                                preferred_element_type=jnp.float32)
            s = s + bias                      # mask (+ state_weight) pre-folded

            # softmax along the key axis, statistics in f32
            m = jnp.max(s, axis=-1, keepdims=True)
            e = jnp.exp(s - m)
            denom = jnp.sum(e, axis=-1, keepdims=True)
            p = e * pl.reciprocal(denom, approx=True)   # EUP slot; ~1e-4 rel err
            # masked_fill(mask == 0, 0) — also zeroes fully-masked rows exactly
            p = jnp.where(is_masked, 0.0, p)

            o_h = jnp.dot(p.astype(compute_dtype), vh,
                          preferred_element_type=jnp.float32)       # (TQ, d_k)
            # Fused output projection: accumulate o_h @ Wo[head rows, :] into a
            # lane-dense (TQ, D) accumulator — no narrow concat stores.
            acc = acc + jnp.dot(o_h.astype(compute_dtype), wo[lo:lo + d_k, :],
                                preferred_element_type=jnp.float32)

        o_ref[...] = (acc + bo_ref[...]).astype(o_ref.dtype)

    return kernel


def pallas_attention_outproj(qp, kp, vp, attn_bias, wo_c, bo, n_heads,
                             compute_dtype):
    """qp/kp/vp: (bs, S, D); attn_bias: (B, S, S) B in {1, bs};
    wo_c: (D, D); bo: (D,) -> (bs, S, D) float32."""
    bs, S, D = qp.shape
    d_k = D // n_heads
    # Cap TQ at 256 so the grid keeps several steps (pipelining + v7x 2 TCs).
    TQ = _pick_tile(S, (256, 128, 64, 32, 16, 8))

    b_bias = attn_bias.shape[0]
    if b_bias == 1:
        bias_map = lambda b, qi: (0, qi, 0)
    else:
        bias_map = lambda b, qi: (b, qi, 0)

    return pl.pallas_call(
        _make_attn_kernel(n_heads, d_k, compute_dtype),
        out_shape=jax.ShapeDtypeStruct((bs, S, D), jnp.float32),
        grid=(bs, S // TQ),
        in_specs=[
            pl.BlockSpec((pl.Squeezed(), TQ, D), lambda b, qi: (b, qi, 0)),  # q tile
            pl.BlockSpec((pl.Squeezed(), S, D), lambda b, qi: (b, 0, 0)),    # K rows
            pl.BlockSpec((pl.Squeezed(), S, D), lambda b, qi: (b, 0, 0)),    # V rows
            pl.BlockSpec((pl.Squeezed(), TQ, S), bias_map),                  # bias rows
            pl.BlockSpec((D, D), lambda b, qi: (0, 0)),                      # Wo resident
            pl.BlockSpec((1, D), lambda b, qi: (0, 0)),                      # bo resident
        ],
        out_specs=pl.BlockSpec((pl.Squeezed(), TQ, D), lambda b, qi: (b, qi, 0)),
        compiler_params=pltpu.CompilerParams(
            dimension_semantics=("parallel", "parallel"),
            vmem_limit_bytes=_VMEM_LIMIT,
        ),
    )(qp, kp, vp, attn_bias, wo_c, bo.reshape(1, D))


# ----------------------------- bias pre-folding -------------------------------

def _fold_mask_bias(mask, state_weight, bs, S):
    """Fold mask (and optional state_weight) into ONE additive (B, S, S) bias:
    masked positions = exactly -1e32 (matches masked_fill), others = sw / 0."""
    m = jnp.asarray(mask, jnp.float32)
    if m.ndim == 4:
        # TODO(synk): per-head masks are not supported; head axis collapsed.
        m = m[:, 0]
    if m.ndim == 2:
        m = m[None]

    if state_weight is None:
        fill = jnp.zeros((), jnp.float32)
    else:
        sw = jnp.asarray(state_weight, jnp.float32)
        if sw.ndim == 4:
            # TODO(synk): per-head state weights not supported; head axis collapsed.
            sw = sw[:, 0]
        fill = sw
        # NOTE: unmasked positions are detected via bias < -1e31 inside the
        # kernel; state_weight values must stay above that threshold.

    bias = jnp.where(m == 0, jnp.float32(-1e32), fill).astype(jnp.float32)
    if bias.ndim == 2:
        bias = bias[None]
    assert bias.shape[-2:] == (S, S) and bias.shape[0] in (1, bs)
    return bias


# ----------------------------- module wrapper --------------------------------

class MultiHeadAttentionPallas:
    """Pallas port of LSKT MultiHeadAttention (forward only).

    compute_dtype=jnp.bfloat16 is recommended on v6e/v7x (bf16 MXU operands,
    f32 accumulation, bf16 qp/kp/vp intermediates); float32 matches the
    PyTorch reference bit-for-bit up to rounding.
    """

    def __init__(self, d_model, n_heads, key, kq_same=True, bias=True,
                 compute_dtype=jnp.float32):
        assert d_model % n_heads == 0
        self.d_model = d_model
        self.d_k = d_model // n_heads
        self.h = n_heads
        self.kq_same = kq_same
        self.compute_dtype = compute_dtype

        keys = jax.random.split(key, 8)
        bound = 1.0 / math.sqrt(d_model)

        def init_linear(kw, kb):
            # stored as (in, out) so kernels compute x @ W + b
            w = jax.random.uniform(kw, (d_model, d_model), jnp.float32, -bound, bound)
            if bias:
                b = jax.random.uniform(kb, (d_model,), jnp.float32, -bound, bound)
            else:
                b = jnp.zeros((d_model,), jnp.float32)
            return w, b

        self.wq, self.bq = init_linear(keys[0], keys[1])
        if kq_same:
            self.wk, self.bk = self.wq, self.bq
        else:
            self.wk, self.bk = init_linear(keys[2], keys[3])
        self.wv, self.bv = init_linear(keys[4], keys[5])
        self.wo, self.bo = init_linear(keys[6], keys[7])

        # Bake 1/sqrt(d_k) into the (copied) Q-projection weights/bias used by
        # the kernels; stored wq/bq stay unscaled (kq_same sharing unaffected).
        scale = 1.0 / math.sqrt(self.d_k)
        wq_s, bq_s = self.wq * scale, self.bq * scale

        # Stacked / concatenated weights, pre-cast ONCE to compute_dtype so no
        # per-step in-kernel weight casts and (for bf16) half the resident VMEM.
        self.w_qkv = jnp.stack([wq_s, self.wk, self.wv]).astype(compute_dtype)
        self.b_qkv = jnp.stack([bq_s, self.bk, self.bv])[:, None, :]          # f32
        self.w_qkv_cat = jnp.concatenate([wq_s, self.wk, self.wv],
                                         axis=1).astype(compute_dtype)        # (D, 3D)
        self.b_qkv_cat = jnp.concatenate([bq_s, self.bk, self.bv])[None, :]   # (1, 3D) f32
        self.wo_c = self.wo.astype(compute_dtype)

    def __call__(self, q, k, v, mask, state_weight=None):
        bs, S, D = q.shape
        assert D == self.d_model
        cd = self.compute_dtype

        # 1) fused Q/K/V projections (qp/kp/vp stored in compute_dtype: bf16
        #    intermediates halve the inter-kernel HBM round trip).
        if (q is k) and (q is v):
            qp, kp, vp = pallas_qkv_proj_shared(
                q.reshape(bs * S, D), self.w_qkv_cat, self.b_qkv_cat, cd, cd)
        else:
            qp, kp, vp = pallas_qkv_proj(
                q.reshape(bs * S, D), k.reshape(bs * S, D), v.reshape(bs * S, D),
                self.w_qkv, self.b_qkv, cd, cd)
        qp = qp.reshape(bs, S, D)
        kp = kp.reshape(bs, S, D)
        vp = vp.reshape(bs, S, D)

        # 2) fold mask (and optional state_weight) into a single additive bias
        attn_bias = _fold_mask_bias(mask, state_weight, bs, S)

        # 3) attention (all heads per step) + fused out_proj
        return pallas_attention_outproj(qp, kp, vp, attn_bias, self.wo_c,
                                        self.bo, self.h, cd)


# --------------------------- pure-JAX reference -------------------------------

def _reference_forward(mha, q, k, v, mask, state_weight=None):
    bs, S, D = q.shape
    h, dk = mha.h, mha.d_k

    def lin(x, w, b):
        return x @ w + b

    qp = lin(q, mha.wq, mha.bq).reshape(bs, S, h, dk).transpose(0, 2, 1, 3)
    kp = lin(k, mha.wk, mha.bk).reshape(bs, S, h, dk).transpose(0, 2, 1, 3)
    vp = lin(v, mha.wv, mha.bv).reshape(bs, S, h, dk).transpose(0, 2, 1, 3)
    scores = (qp @ kp.transpose(0, 1, 3, 2)) / math.sqrt(dk)
    scores = jnp.where(mask == 0, -1e32, scores)
    if state_weight is not None:
        scores = scores + state_weight
        scores = jnp.where(mask == 0, -1e32, scores)
    p = jax.nn.softmax(scores, axis=-1)
    p = jnp.where(mask == 0, 0.0, p)
    o = p @ vp
    concat = o.transpose(0, 2, 1, 3).reshape(bs, S, D)
    return lin(concat, mha.wo, mha.bo)


# ---------------------------------- main --------------------------------------

if __name__ == "__main__":
    key = jax.random.PRNGKey(0)
    k_param, k_q, k_k, k_v = jax.random.split(key, 4)

    bs, S, d_model, n_heads = 2, 8, 32, 4

    q = jax.random.normal(k_q, (bs, S, d_model), jnp.float32)
    k = jax.random.normal(k_k, (bs, S, d_model), jnp.float32)
    v = jax.random.normal(k_v, (bs, S, d_model), jnp.float32)
    mask = jnp.tril(jnp.ones((S, S), jnp.float32))   # causal mask

    # ---- f32 path, distinct q/k/v ----
    mha = MultiHeadAttentionPallas(d_model, n_heads, k_param, kq_same=True, bias=True)
    out = mha(q, k, v, mask)
    jax.block_until_ready(out)
    assert out.shape == (bs, S, d_model)
    ref = _reference_forward(mha, q, k, v, mask)
    err = float(jnp.max(jnp.abs(out - ref)))
    assert err < 1e-2, f"f32 cross-attn mismatch vs reference: max abs err = {err}"

    # ---- f32 path, self-attention fast path + state_weight ----
    sw = 0.1 * jax.random.normal(jax.random.PRNGKey(1), (S, S), jnp.float32)
    out_sa = mha(q, q, q, mask, state_weight=sw)
    jax.block_until_ready(out_sa)
    ref_sa = _reference_forward(mha, q, q, q, mask, state_weight=sw)
    err_sa = float(jnp.max(jnp.abs(out_sa - ref_sa)))
    assert err_sa < 1e-2, f"self-attn mismatch vs reference: max abs err = {err_sa}"

    # ---- bf16 compute path (MXU operands bf16, f32 accumulation) ----
    mha_bf16 = MultiHeadAttentionPallas(d_model, n_heads, k_param, kq_same=True,
                                        bias=True, compute_dtype=jnp.bfloat16)
    out_bf16 = mha_bf16(q, k, v, mask)
    jax.block_until_ready(out_bf16)
    err_bf16 = float(jnp.max(jnp.abs(out_bf16 - ref)))
    assert err_bf16 < 1e-1, f"bf16 mismatch vs f32 reference: max abs err = {err_bf16}"

    print("KERNEL_OK")
</pallas_src>

<mosaic_0001>
module attributes {stable_mosaic.version = 11 : i64} {
  func.func @kernel(%arg0: i32, %arg1: memref<16x32xf32, #tpu.memory_space<vmem>>, %arg2: memref<16x32xf32, #tpu.memory_space<vmem>>, %arg3: memref<16x32xf32, #tpu.memory_space<vmem>>, %arg4: memref<3x32x32xf32, #tpu.memory_space<vmem>>, %arg5: memref<3x1x32xf32, #tpu.memory_space<vmem>>, %arg6: memref<16x32xf32, #tpu.memory_space<vmem>>, %arg7: memref<16x32xf32, #tpu.memory_space<vmem>>, %arg8: memref<16x32xf32, #tpu.memory_space<vmem>>) attributes {dimension_semantics = [#tpu.dimension_semantics<parallel>], iteration_bounds = array<i64: 1>, scalar_prefetch = 0 : i64, scratch_operands = 0 : i64, tpu.core_type = #tpu.core_type<tc>, window_params = [{transform_indices = @transform_0, window_bounds = array<i64: 16, 32>}, {transform_indices = @transform_1, window_bounds = array<i64: 16, 32>}, {transform_indices = @transform_2, window_bounds = array<i64: 16, 32>}, {pipeline_mode = #tpu.pipeline_mode<synchronous>, transform_indices = @transform_3, window_bounds = array<i64: 3, 32, 32>}, {pipeline_mode = #tpu.pipeline_mode<synchronous>, transform_indices = @transform_4, window_bounds = array<i64: 3, 1, 32>}, {transform_indices = @transform_5, window_bounds = array<i64: 16, 32>}, {transform_indices = @transform_6, window_bounds = array<i64: 16, 32>}, {transform_indices = @transform_7, window_bounds = array<i64: 16, 32>}]} {
    %c0 = arith.constant 0 : index
    %c0_0 = arith.constant 0 : index
    %0 = vector.load %arg1[%c0, %c0_0] : memref<16x32xf32, #tpu.memory_space<vmem>>, vector<16x32xf32>
    %c0_1 = arith.constant 0 : index
    %c0_2 = arith.constant 0 : index
    %c0_3 = arith.constant 0 : index
    %1 = vector.load %arg4[%c0_1, %c0_2, %c0_3] : memref<3x32x32xf32, #tpu.memory_space<vmem>>, vector<1x32x32xf32>
    %2 = vector.shape_cast %1 : vector<1x32x32xf32> to vector<32x32xf32>
    %cst = arith.constant dense<0.000000e+00> : vector<16x32xf32>
    %3 = tpu.matmul %0, %2, %cst {dimension_numbers = #tpu.dot_dimension_numbers<[1], [0], [0], [1], [0, 0, 1, 1], [], []>} : vector<16x32xf32>, vector<32x32xf32>, vector<16x32xf32> -> vector<16x32xf32>
    %c0_4 = arith.constant 0 : index
    %c0_5 = arith.constant 0 : index
    %c0_6 = arith.constant 0 : index
    %4 = vector.load %arg5[%c0_4, %c0_5, %c0_6] : memref<3x1x32xf32, #tpu.memory_space<vmem>>, vector<1x1x32xf32>
    %5 = vector.shape_cast %4 : vector<1x1x32xf32> to vector<1x32xf32>
    %6 = vector.broadcast %5 : vector<1x32xf32> to vector<16x32xf32>
    %7 = arith.addf %3, %6 : vector<16x32xf32>
    %c0_7 = arith.constant 0 : index
    %c0_8 = arith.constant 0 : index
    %8 = vector.load %arg6[%c0_7, %c0_8] : memref<16x32xf32, #tpu.memory_space<vmem>>, vector<16x32xf32>
    tpu.vector_store %arg6[%c0_7, %c0_8], %7 {strides = array<i32>} : memref<16x32xf32, #tpu.memory_space<vmem>>, vector<16x32xf32>,
    %c0_9 = arith.constant 0 : index
    %c0_10 = arith.constant 0 : index
    %9 = vector.load %arg2[%c0_9, %c0_10] : memref<16x32xf32, #tpu.memory_space<vmem>>, vector<16x32xf32>
    %c1 = arith.constant 1 : index
    %c0_11 = arith.constant 0 : index
    %c0_12 = arith.constant 0 : index
    %10 = vector.load %arg4[%c1, %c0_11, %c0_12] : memref<3x32x32xf32, #tpu.memory_space<vmem>>, vector<1x32x32xf32>
    %11 = vector.shape_cast %10 : vector<1x32x32xf32> to vector<32x32xf32>
    %cst_13 = arith.constant dense<0.000000e+00> : vector<16x32xf32>
    %12 = tpu.matmul %9, %11, %cst_13 {dimension_numbers = #tpu.dot_dimension_numbers<[1], [0], [0], [1], [0, 0, 1, 1], [], []>} : vector<16x32xf32>, vector<32x32xf32>, vector<16x32xf32> -> vector<16x32xf32>
    %c1_14 = arith.constant 1 : index
    %c0_15 = arith.constant 0 : index
    %c0_16 = arith.constant 0 : index
    %13 = vector.load %arg5[%c1_14, %c0_15, %c0_16] : memref<3x1x32xf32, #tpu.memory_space<vmem>>, vector<1x1x32xf32>
    %14 = vector.shape_cast %13 : vector<1x1x32xf32> to vector<1x32xf32>
    %15 = vector.broadcast %14 : vector<1x32xf32> to vector<16x32xf32>
    %16 = arith.addf %12, %15 : vector<16x32xf32>
    %c0_17 = arith.constant 0 : index
    %c0_18 = arith.constant 0 : index
    %17 = vector.load %arg7[%c0_17, %c0_18] : memref<16x32xf32, #tpu.memory_space<vmem>>, vector<16x32xf32>
    tpu.vector_store %arg7[%c0_17, %c0_18], %16 {strides = array<i32>} : memref<16x32xf32, #tpu.memory_space<vmem>>, vector<16x32xf32>,
    %c0_19 = arith.constant 0 : index
    %c0_20 = arith.constant 0 : index
    %18 = vector.load %arg3[%c0_19, %c0_20] : memref<16x32xf32, #tpu.memory_space<vmem>>, vector<16x32xf32>
    %c2 = arith.constant 2 : index
    %c0_21 = arith.constant 0 : index
    %c0_22 = arith.constant 0 : index
    %19 = vector.load %arg4[%c2, %c0_21, %c0_22] : memref<3x32x32xf32, #tpu.memory_space<vmem>>, vector<1x32x32xf32>
    %20 = vector.shape_cast %19 : vector<1x32x32xf32> to vector<32x32xf32>
    %cst_23 = arith.constant dense<0.000000e+00> : vector<16x32xf32>
    %21 = tpu.matmul %18, %20, %cst_23 {dimension_numbers = #tpu.dot_dimension_numbers<[1], [0], [0], [1], [0, 0, 1, 1], [], []>} : vector<16x32xf32>, vector<32x32xf32>, vector<16x32xf32> -> vector<16x32xf32>
    %c2_24 = arith.constant 2 : index
    %c0_25 = arith.constant 0 : index
    %c0_26 = arith.constant 0 : index
    %22 = vector.load %arg5[%c2_24, %c0_25, %c0_26] : memref<3x1x32xf32, #tpu.memory_space<vmem>>, vector<1x1x32xf32>
    %23 = vector.shape_cast %22 : vector<1x1x32xf32> to vector<1x32xf32>
    %24 = vector.broadcast %23 : vector<1x32xf32> to vector<16x32xf32>
    %25 = arith.addf %21, %24 : vector<16x32xf32>
    %c0_27 = arith.constant 0 : index
    %c0_28 = arith.constant 0 : index
    %26 = vector.load %arg8[%c0_27, %c0_28] : memref<16x32xf32, #tpu.memory_space<vmem>>, vector<16x32xf32>
    tpu.vector_store %arg8[%c0_27, %c0_28], %25 {strides = array<i32>} : memref<16x32xf32, #tpu.memory_space<vmem>>, vector<16x32xf32>,
    return
  }
  func.func @transform_0(%arg0: i32) -> (i32, i32) {
    %c0_i32 = arith.constant 0 : i32
    %c0_i32_0 = arith.constant 0 : i32
    return %arg0, %c0_i32 : i32, i32
  }
  func.func @transform_1(%arg0: i32) -> (i32, i32) {
    %c0_i32 = arith.constant 0 : i32
    %c0_i32_0 = arith.constant 0 : i32
    return %arg0, %c0_i32 : i32, i32
  }
  func.func @transform_2(%arg0: i32) -> (i32, i32) {
    %c0_i32 = arith.constant 0 : i32
    %c0_i32_0 = arith.constant 0 : i32
    return %arg0, %c0_i32 : i32, i32
  }
  func.func @transform_3(%arg0: i32) -> (i32, i32, i32) {
    %c0_i32 = arith.constant 0 : i32
    %c0_i32_0 = arith.constant 0 : i32
    %c0_i32_1 = arith.constant 0 : i32
    %c0_i32_2 = arith.constant 0 : i32
    return %c0_i32, %c0_i32_0, %c0_i32_1 : i32, i32, i32
  }
  func.func @transform_4(%arg0: i32) -> (i32, i32, i32) {
    %c0_i32 = arith.constant 0 : i32
    %c0_i32_0 = arith.constant 0 : i32
    %c0_i32_1 = arith.constant 0 : i32
    %c0_i32_2 = arith.constant 0 : i32
    return %c0_i32, %c0_i32_0, %c0_i32_1 : i32, i32, i32
  }
  func.func @transform_5(%arg0: i32) -> (i32, i32) {
    %c0_i32 = arith.constant 0 : i32
    %c0_i32_0 = arith.constant 0 : i32
    return %arg0, %c0_i32 : i32, i32
  }
  func.func @transform_6(%arg0: i32) -> (i32, i32) {
    %c0_i32 = arith.constant 0 : i32
    %c0_i32_0 = arith.constant 0 : i32
    return %arg0, %c0_i32 : i32, i32
  }
  func.func @transform_7(%arg0: i32) -> (i32, i32) {
    %c0_i32 = arith.constant 0 : i32
    %c0_i32_0 = arith.constant 0 : i32
    return %arg0, %c0_i32 : i32, i32
  }
}

</mosaic_0001>

<llo_original>
// kernel: tpu_custom_call.1
$region0: #{tpu_custom_call.1}
  #allocation0 [shape = 'u32[]', space=smem, size = 0x4, offset = 0x4, fixed_abs, tag = 'smem constant byte address 0x4 - core index']
  #allocation1 [shape = 'u32[144,128]{1,0:T(1,128)}', space=vmem, size = 0x12000, scoped, tag = 'internal scratch']
  %s0 = inlined_call_operand.hbm [shape: f32[16,32], index: 0, kind: input, shape index: {}]
  %s1 = inlined_call_operand.hbm [shape: f32[16,32], index: 1, kind: input, shape index: {}]
  %s2 = inlined_call_operand.hbm [shape: f32[16,32], index: 2, kind: input, shape index: {}]
  %s3 = inlined_call_operand.hbm [shape: f32[3,32,32], index: 3, kind: input, shape index: {}]
  %s4 = inlined_call_operand.vmem [shape: f32[3,1,32], index: 4, kind: input, shape index: {}]
  %s5 = inlined_call_operand.hbm [shape: f32[16,32], index: 5, kind: output, shape index: {0}]
  %s6 = inlined_call_operand.hbm [shape: f32[16,32], index: 6, kind: output, shape index: {1}]
  %s7 = inlined_call_operand.hbm [shape: f32[16,32], index: 7, kind: output, shape index: {2}]
  %8 = xla_tuple %s5, %s6, %s7
  %s9 = sld [smem:[#allocation0]]
  $region62: #{tpu_custom_call.1} parent=0
    _
  %s11 = ssub.s32 1, %s9
  %s12 = scalar_select 0, %s11, %s9
  $region1: #{tpu_custom_call.1} parent=0
    #allocation2 [shape = 'u8[8192]{0}', space=vmem, size = 0x2000, scoped, tag = 'input window, operand 0, single buffered']
    #allocation3 [shape = 's32[1]{0}', space=sflag, size = 0x4, scoped, tag = 'scoped memory for tpu_custom_call.1']
    #allocation4 [shape = 's32[1]{0}', space=sflag, size = 0x4, scoped, tag = 'scoped memory for tpu_custom_call.1']
    #allocation5 [shape = 'u8[8192]{0}', space=vmem, size = 0x2000, scoped, tag = 'input window, operand 1, single buffered']
    #allocation6 [shape = 's32[1]{0}', space=sflag, size = 0x4, scoped, tag = 'scoped memory for tpu_custom_call.1']
    #allocation7 [shape = 'u8[8192]{0}', space=vmem, size = 0x2000, scoped, tag = 'input window, operand 2, single buffered']
    #allocation8 [shape = 'u8[49152]{0}', space=vmem, size = 0xc000, scoped, tag = 'input window, operand 3, single buffered']
    #allocation9 [shape = 's32[1]{0}', space=sflag, size = 0x4, scoped, tag = 'scoped memory for tpu_custom_call.1']
    #allocation10 [shape = 'u8[8192]{0}', space=vmem, size = 0x2000, scoped, tag = 'output window, operand 0, single buffered']
    #allocation11 [shape = 'u8[8192]{0}', space=vmem, size = 0x2000, scoped, tag = 'output window, operand 1, single buffered']
    #allocation12 [shape = 's32[1]{0}', space=sflag, size = 0x4, scoped, tag = 'scoped memory for tpu_custom_call.1']
    #allocation13 [shape = 'u8[8192]{0}', space=vmem, size = 0x2000, scoped, tag = 'output window, operand 2, single buffered']
    %13 = vsyncpa [#allocation3], 0
    %14 = vsyncpa [#allocation6], 0
    %15 = vsyncpa [#allocation9], 0
    %16 = vsyncpa [#allocation4], 0
    %17 = vsyncpa [#allocation12], 0
    // Predicated region
    $region2: #{tpu_custom_call.1} parent=1 // pred_check
      _
    $region3: #{tpu_custom_call.1} parent=1 // pred_check_branch
      %19 = sbr.rel (0) target = $region5
    $region4: #{tpu_custom_call.1} parent=1 // pred_region
      %s21 = ssub.s32 256, 256
      %22 = vsyncadd [#allocation3], %s21
      %s23 = sshll.u32 [#allocation2], 4
      %s24 = int_to_ptr.vmem [resolvable:$true] %s23
      %29 = dma.hbm_to_vmem [thread:$0]  %s0, 256, %s24, [#allocation3], 128, 128, 8
    $region5: #{tpu_custom_call.1} parent=1 // pred_fallthru
      _
    // Predicated region
    $region6: #{tpu_custom_call.1} parent=1 // pred_check
      _
    $region7: #{tpu_custom_call.1} parent=1 // pred_check_branch
      %31 = sbr.rel (0) target = $region9
    $region8: #{tpu_custom_call.1} parent=1 // pred_region
      %s33 = ssub.s32 256, 256
      %34 = vsyncadd [#allocation6], %s33
      %s35 = sshll.u32 [#allocation5], 4
      %s36 = int_to_ptr.vmem [resolvable:$true] %s35
      %41 = dma.hbm_to_vmem [thread:$0]  %s1, 256, %s36, [#allocation6], 128, 128, 8
    $region9: #{tpu_custom_call.1} parent=1 // pred_fallthru
      _
    // Predicated region
    $region10: #{tpu_custom_call.1} parent=1 // pred_check
      _
    $region11: #{tpu_custom_call.1} parent=1 // pred_check_branch
      %43 = sbr.rel (0) target = $region13
    $region12: #{tpu_custom_call.1} parent=1 // pred_region
      %s45 = ssub.s32 256, 256
      %46 = vsyncadd [#allocation6], %s45
      %s47 = sshll.u32 [#allocation7], 4
      %s48 = int_to_ptr.vmem [resolvable:$true] %s47
      %53 = dma.hbm_to_vmem [thread:$0]  %s2, 256, %s48, [#allocation6], 128, 128, 8
    $region13: #{tpu_custom_call.1} parent=1 // pred_fallthru
      _
    // Predicated region
    $region14: #{tpu_custom_call.1} parent=1 // pred_check
      _
    $region15: #{tpu_custom_call.1} parent=1 // pred_check_branch
      %55 = sbr.rel (0) target = $region17
    $region16: #{tpu_custom_call.1} parent=1 // pred_region
      %s57 = ssub.s32 1536, 1536
      %58 = vsyncadd [#allocation9], %s57
      %s59 = sshll.u32 [#allocation8], 4
      %s60 = int_to_ptr.vmem [resolvable:$true] %s59
      %65 = dma.hbm_to_vmem [thread:$0]  %s3, 1536, %s60, [#allocation9], 128, 128, 8
    $region17: #{tpu_custom_call.1} parent=1 // pred_fallthru
      _
    // Predicated region
    $region18: #{tpu_custom_call.1} parent=1 // pred_check
      _
    $region19: #{tpu_custom_call.1} parent=1 // pred_check_branch
      %67 = sbr.rel (0) target = $region21
    $region20: #{tpu_custom_call.1} parent=1 // pred_region
      _
    $region21: #{tpu_custom_call.1} parent=1 // pred_fallthru
      _
    // Predicated region
    $region22: #{tpu_custom_call.1} parent=1 // pred_check
      _
    $region23: #{tpu_custom_call.1} parent=1 // pred_check_branch
      %69 = sbr.rel (0) target = $region25
    $region24: #{tpu_custom_call.1} parent=1 // pred_region
      %70 = dma.done [#allocation3], 256
    $region25: #{tpu_custom_call.1} parent=1 // pred_fallthru
      _
    // Predicated region
    $region26: #{tpu_custom_call.1} parent=1 // pred_check
      _
    $region27: #{tpu_custom_call.1} parent=1 // pred_check_branch
      %72 = sbr.rel (0) target = $region29
    $region28: #{tpu_custom_call.1} parent=1 // pred_region
      %73 = dma.done [#allocation6], 256
    $region29: #{tpu_custom_call.1} parent=1 // pred_fallthru
      _
    // Predicated region
    $region30: #{tpu_custom_call.1} parent=1 // pred_check
      _
    $region31: #{tpu_custom_call.1} parent=1 // pred_check_branch
      %75 = sbr.rel (0) target = $region33
    $region32: #{tpu_custom_call.1} parent=1 // pred_region
      %76 = dma.done [#allocation6], 256
    $region33: #{tpu_custom_call.1} parent=1 // pred_fallthru
      _
    // Predicated region
    $region34: #{tpu_custom_call.1} parent=1 // pred_check
      _
    $region35: #{tpu_custom_call.1} parent=1 // pred_check_branch
      %78 = sbr.rel (0) target = $region37
    $region36: #{tpu_custom_call.1} parent=1 // pred_region
      %79 = dma.done [#allocation9], 1536
    $region37: #{tpu_custom_call.1} parent=1 // pred_fallthru
      _
    %v80 = vld [vmem:[#allocation2] sm:$0xff]
    %v81 = vld [vmem:[#allocation2 + $0x8] sm:$0xff]
    %v82 = vld [vmem:[#allocation8] sm:$0xff]
    %v83 = vld [vmem:[#allocation8 + $0x8] sm:$0xff]
    %v84 = vld [vmem:[#allocation8 + $0x10] sm:$0xff]
    %v85 = vld [vmem:[#allocation8 + $0x18] sm:$0xff]
    %v86 = vld [vmem:[%s4] sm:$0x1]
    %v88 = vlaneseq
    %v89 = vshrl.u32 %v88, 7
    %v90 = vsub.s32 0, %v89
    %v91 = vrot.slane %v86, %v90
    %vm93 = vcmask 261120
    %v95 = vsel %vm93, %v80, 0
    %v98 = vsel %vm93, %v81, 0
    %100 = vmatprep.subr.mxu0 0.0
    %101 = vmatpush1.msra.mxu0 %v82
    %102 = vmatprep.subr.mxu0 0.0
    %103 = vmatpush1.msra.mxu0 %v83
    %104 = vmatprep.subr.mxu0 0.0
    %105 = vmatpush1.msra.mxu0 %v84
    %106 = vmatprep.subr.mxu0 0.0
    %107 = vmatpush1.msra.mxu0 %v85
    %108 = vmatprep.subr.mxu0 0.0
    %109 = vmatpush1.msra.mxu0 0.0
    %110 = vmatprep.subr.mxu0 0.0
    %111 = vmatpush1.msra.mxu0 0.0
    %112 = vmatprep.subr.mxu0 0.0
    %113 = vmatpush1.msra.mxu0 0.0
    %114 = vmatprep.subr.mxu0 0.0
    %115 = vmatpush1.msra.mxu0 0.0
    %116 = vmatprep.subr.mxu0 0.0
    %117 = vmatpush1.msra.mxu0 0.0
    %118 = vmatprep.subr.mxu0 0.0
    %119 = vmatpush1.msra.mxu0 0.0
    %120 = vmatprep.subr.mxu0 0.0
    %121 = vmatpush1.msra.mxu0 0.0
    %122 = vmatprep.subr.mxu0 0.0
    %123 = vmatpush1.msra.mxu0 0.0
    %124 = vmatprep.subr.mxu0 0.0
    %125 = vmatpush1.msra.mxu0 0.0
    %126 = vmatprep.subr.mxu0 0.0
    %127 = vmatpush1.msra.mxu0 0.0
    %128 = vmatprep.subr.mxu0 0.0
    %129 = vmatpush1.msra.mxu0 0.0
    %130 = vmatprep.subr.mxu0 0.0
    %131 = vmatpush1.msra.mxu0 0.0
    %132 = vmatprep.subr.mxu0 0.0
    %133 = vmatpush1.msra.mxu0 0.0
    %134 = vmatprep.subr.mxu0 0.0
    %135 = vmatpush1.msra.mxu0 0.0
    %136 = vmatprep.subr.mxu0 0.0
    %137 = vmatpush1.msra.mxu0 0.0
    %138 = vmatprep.subr.mxu0 0.0
    %139 = vmatpush1.msra.mxu0 0.0
    %140 = vmatprep.subr.mxu0 0.0
    %141 = vmatpush1.msra.mxu0 0.0
    %142 = vmatprep.subr.mxu0 0.0
    %143 = vmatpush1.msra.mxu0 0.0
    %144 = vmatprep.subr.mxu0 0.0
    %145 = vmatpush1.msra.mxu0 0.0
    %146 = vmatprep.subr.mxu0 0.0
    %147 = vmatpush1.msra.mxu0 0.0
    %148 = vmatprep.subr.mxu0 0.0
    %149 = vmatpush1.msra.mxu0 0.0
    %150 = vmatprep.subr.mxu0 0.0
    %151 = vmatpush1.msra.mxu0 0.0
    %152 = vmatprep.subr.mxu0 0.0
    %153 = vmatpush1.msra.mxu0 0.0
    %154 = vmatprep.subr.mxu0 0.0
    %155 = vmatpush1.msra.mxu0 0.0
    %156 = vmatprep.subr.mxu0 0.0
    %157 = vmatpush1.msra.mxu0 0.0
    %158 = vmatprep.subr.mxu0 0.0
    %159 = vmatpush1.msra.mxu0 0.0
    %160 = vmatprep.subr.mxu0 0.0
    %161 = vmatpush1.msra.mxu0 0.0
    %162 = vmatprep.subr.mxu0 0.0
    %163 = vmatpush1.msra.mxu0 0.0
    %164 = vmatprep.mubr.f32.mxu0 0.0
    %165 = vmatmul.mubr.f32.gmra.mrb[0].mxu0 %v95
    %v166 = vpop.f32.mrb[0].mxu0
    %v167 = vadd.f32 %v91, %v166
    %v168 = vpop.f32.mrb[0].mxu0
    %169 = vmatprep.mubr.f32.mxu0 0.0
    %170 = vmatmul.mubr.f32.gmra.mrb[0].mxu0 %v98
    %v171 = vpop.f32.mrb[0].mxu0
    %v172 = vadd.f32 %v91, %v171
    %v173 = vpop.f32.mrb[0].mxu0
    %174 = vdwg.mxu0
    %175 = vst.msk [vmem:[#allocation10] sm:$0xff] %vm93, %v167
    %176 = vst.msk [vmem:[#allocation10 + $0x8] sm:$0xff] %vm93, %v172
    %v177 = vld [vmem:[#allocation5] sm:$0xff]
    %v178 = vld [vmem:[#allocation5 + $0x8] sm:$0xff]
    %s179 = scalar_lea.vmem [#allocation8], 32
    %v180 = vld [vmem:[%s179] sm:$0xff]
    %v181 = vld [vmem:[%s179 + $0x8] sm:$0xff]
    %v182 = vld [vmem:[%s179 + $0x10] sm:$0xff]
    %v183 = vld [vmem:[%s179 + $0x18] sm:$0xff]
    %s184 = scalar_lea.vmem %s4, 1
    %v185 = vld [vmem:[%s184] sm:$0x1]
    %v187 = vlaneseq
    %v188 = vshrl.u32 %v187, 7
    %v189 = vsub.s32 0, %v188
    %v190 = vrot.slane %v185, %v189
    %v193 = vsel %vm93, %v177, 0
    %v196 = vsel %vm93, %v178, 0
    %198 = vmatprep.subr.mxu0 0.0
    %199 = vmatpush1.msra.mxu0 %v180
    %200 = vmatprep.subr.mxu0 0.0
    %201 = vmatpush1.msra.mxu0 %v181
    %202 = vmatprep.subr.mxu0 0.0
    %203 = vmatpush1.msra.mxu0 %v182
    %204 = vmatprep.subr.mxu0 0.0
    %205 = vmatpush1.msra.mxu0 %v183
    %206 = vmatprep.subr.mxu0 0.0
    %207 = vmatpush1.msra.mxu0 0.0
    %208 = vmatprep.subr.mxu0 0.0
    %209 = vmatpush1.msra.mxu0 0.0
    %210 = vmatprep.subr.mxu0 0.0
    %211 = vmatpush1.msra.mxu0 0.0
    %212 = vmatprep.subr.mxu0 0.0
    %213 = vmatpush1.msra.mxu0 0.0
    %214 = vmatprep.subr.mxu0 0.0
    %215 = vmatpush1.msra.mxu0 0.0
    %216 = vmatprep.subr.mxu0 0.0
    %217 = vmatpush1.msra.mxu0 0.0
    %218 = vmatprep.subr.mxu0 0.0
    %219 = vmatpush1.msra.mxu0 0.0
    %220 = vmatprep.subr.mxu0 0.0
    %221 = vmatpush1.msra.mxu0 0.0
    %222 = vmatprep.subr.mxu0 0.0
    %223 = vmatpush1.msra.mxu0 0.0
    %224 = vmatprep.subr.mxu0 0.0
    %225 = vmatpush1.msra.mxu0 0.0
    %226 = vmatprep.subr.mxu0 0.0
    %227 = vmatpush1.msra.mxu0 0.0
    %228 = vmatprep.subr.mxu0 0.0
    %229 = vmatpush1.msra.mxu0 0.0
    %230 = vmatprep.subr.mxu0 0.0
    %231 = vmatpush1.msra.mxu0 0.0
    %232 = vmatprep.subr.mxu0 0.0
    %233 = vmatpush1.msra.mxu0 0.0
    %234 = vmatprep.subr.mxu0 0.0
    %235 = vmatpush1.msra.mxu0 0.0
    %236 = vmatprep.subr.mxu0 0.0
    %237 = vmatpush1.msra.mxu0 0.0
    %238 = vmatprep.subr.mxu0 0.0
    %239 = vmatpush1.msra.mxu0 0.0
    %240 = vmatprep.subr.mxu0 0.0
    %241 = vmatpush1.msra.mxu0 0.0
    %242 = vmatprep.subr.mxu0 0.0
    %243 = vmatpush1.msra.mxu0 0.0
    %244 = vmatprep.subr.mxu0 0.0
    %245 = vmatpush1.msra.mxu0 0.0
    %246 = vmatprep.subr.mxu0 0.0
    %247 = vmatpush1.msra.mxu0 0.0
    %248 = vmatprep.subr.mxu0 0.0
    %249 = vmatpush1.msra.mxu0 0.0
    %250 = vmatprep.subr.mxu0 0.0
    %251 = vmatpush1.msra.mxu0 0.0
    %252 = vmatprep.subr.mxu0 0.0
    %253 = vmatpush1.msra.mxu0 0.0
    %254 = vmatprep.subr.mxu0 0.0
    %255 = vmatpush1.msra.mxu0 0.0
    %256 = vmatprep.subr.mxu0 0.0
    %257 = vmatpush1.msra.mxu0 0.0
    %258 = vmatprep.subr.mxu0 0.0
    %259 = vmatpush1.msra.mxu0 0.0
    %260 = vmatprep.subr.mxu0 0.0
    %261 = vmatpush1.msra.mxu0 0.0
    %262 = vmatprep.mubr.f32.mxu0 0.0
    %263 = vmatmul.mubr.f32.gmra.mrb[0].mxu0 %v193
    %v264 = vpop.f32.mrb[0].mxu0
    %v265 = vadd.f32 %v190, %v264
    %v266 = vpop.f32.mrb[0].mxu0
    %267 = vmatprep.mubr.f32.mxu0 0.0
    %268 = vmatmul.mubr.f32.gmra.mrb[0].mxu0 %v196
    %v269 = vpop.f32.mrb[0].mxu0
    %v270 = vadd.f32 %v190, %v269
    %v271 = vpop.f32.mrb[0].mxu0
    %272 = vdwg.mxu0
    %273 = vst.msk [vmem:[#allocation11] sm:$0xff] %vm93, %v265
    %274 = vst.msk [vmem:[#allocation11 + $0x8] sm:$0xff] %vm93, %v270
    %v275 = vld [vmem:[#allocation7] sm:$0xff]
    %v276 = vld [vmem:[#allocation7 + $0x8] sm:$0xff]
    %s277 = scalar_lea.vmem [#allocation8], 64
    %v278 = vld [vmem:[%s277] sm:$0xff]
    %v279 = vld [vmem:[%s277 + $0x8] sm:$0xff]
    %v280 = vld [vmem:[%s277 + $0x10] sm:$0xff]
    %v281 = vld [vmem:[%s277 + $0x18] sm:$0xff]
    %s282 = scalar_lea.vmem %s4, 2
    %v283 = vld [vmem:[%s282] sm:$0x1]
    %v285 = vlaneseq
    %v286 = vshrl.u32 %v285, 7
    %v287 = vsub.s32 0, %v286
    %v288 = vrot.slane %v283, %v287
    %v291 = vsel %vm93, %v275, 0
    %v294 = vsel %vm93, %v276, 0
    %296 = vmatprep.subr.mxu0 0.0
    %297 = vmatpush1.msra.mxu0 %v278
    %298 = vmatprep.subr.mxu0 0.0
    %299 = vmatpush1.msra.mxu0 %v279
    %300 = vmatprep.subr.mxu0 0.0
    %301 = vmatpush1.msra.mxu0 %v280
    %302 = vmatprep.subr.mxu0 0.0
    %303 = vmatpush1.msra.mxu0 %v281
    %304 = vmatprep.subr.mxu0 0.0
    %305 = vmatpush1.msra.mxu0 0.0
    %306 = vmatprep.subr.mxu0 0.0
    %307 = vmatpush1.msra.mxu0 0.0
    %308 = vmatprep.subr.mxu0 0.0
    %309 = vmatpush1.msra.mxu0 0.0
    %310 = vmatprep.subr.mxu0 0.0
    %311 = vmatpush1.msra.mxu0 0.0
    %312 = vmatprep.subr.mxu0 0.0
    %313 = vmatpush1.msra.mxu0 0.0
    %314 = vmatprep.subr.mxu0 0.0
    %315 = vmatpush1.msra.mxu0 0.0
    %316 = vmatprep.subr.mxu0 0.0
    %317 = vmatpush1.msra.mxu0 0.0
    %318 = vmatprep.subr.mxu0 0.0
    %319 = vmatpush1.msra.mxu0 0.0
    %320 = vmatprep.subr.mxu0 0.0
    %321 = vmatpush1.msra.mxu0 0.0
    %322 = vmatprep.subr.mxu0 0.0
    %323 = vmatpush1.msra.mxu0 0.0
    %324 = vmatprep.subr.mxu0 0.0
    %325 = vmatpush1.msra.mxu0 0.0
    %326 = vmatprep.subr.mxu0 0.0
    %327 = vmatpush1.msra.mxu0 0.0
    %328 = vmatprep.subr.mxu0 0.0
    %329 = vmatpush1.msra.mxu0 0.0
    %330 = vmatprep.subr.mxu0 0.0
    %331 = vmatpush1.msra.mxu0 0.0
    %332 = vmatprep.subr.mxu0 0.0
    %333 = vmatpush1.msra.mxu0 0.0
    %334 = vmatprep.subr.mxu0 0.0
    %335 = vmatpush1.msra.mxu0 0.0
    %336 = vmatprep.subr.mxu0 0.0
    %337 = vmatpush1.msra.mxu0 0.0
    %338 = vmatprep.subr.mxu0 0.0
    %339 = vmatpush1.msra.mxu0 0.0
    %340 = vmatprep.subr.mxu0 0.0
    %341 = vmatpush1.msra.mxu0 0.0
    %342 = vmatprep.subr.mxu0 0.0
    %343 = vmatpush1.msra.mxu0 0.0
    %344 = vmatprep.subr.mxu0 0.0
    %345 = vmatpush1.msra.mxu0 0.0
    %346 = vmatprep.subr.mxu0 0.0
    %347 = vmatpush1.msra.mxu0 0.0
    %348 = vmatprep.subr.mxu0 0.0
    %349 = vmatpush1.msra.mxu0 0.0
    %350 = vmatprep.subr.mxu0 0.0
    %351 = vmatpush1.msra.mxu0 0.0
    %352 = vmatprep.subr.mxu0 0.0
    %353 = vmatpush1.msra.mxu0 0.0
    %354 = vmatprep.subr.mxu0 0.0
    %355 = vmatpush1.msra.mxu0 0.0
    %356 = vmatprep.subr.mxu0 0.0
    %357 = vmatpush1.msra.mxu0 0.0
    %358 = vmatprep.subr.mxu0 0.0
    %359 = vmatpush1.msra.mxu0 0.0
    %360 = vmatprep.mubr.f32.mxu0 0.0
    %361 = vmatmul.mubr.f32.gmra.mrb[0].mxu0 %v291
    %v362 = vpop.f32.mrb[0].mxu0
    %v363 = vadd.f32 %v288, %v362
    %v364 = vpop.f32.mrb[0].mxu0
    %365 = vmatprep.mubr.f32.mxu0 0.0
    %366 = vmatmul.mubr.f32.gmra.mrb[0].mxu0 %v294
    %v367 = vpop.f32.mrb[0].mxu0
    %v368 = vadd.f32 %v288, %v367
    %v369 = vpop.f32.mrb[0].mxu0
    %370 = vdwg.mxu0
    %371 = vst.msk [vmem:[#allocation13] sm:$0xff] %vm93, %v363
    %372 = vst.msk [vmem:[#allocation13 + $0x8] sm:$0xff] %vm93, %v368
    // Predicated region
    $region38: #{tpu_custom_call.1} parent=1 // pred_check
      _
    $region39: #{tpu_custom_call.1} parent=1 // pred_check_branch
      %374 = sbr.rel (0) target = $region41
    $region40: #{tpu_custom_call.1} parent=1 // pred_region
      %s376 = ssub.s32 256, 256
      %377 = vsyncadd [#allocation4], %s376
      %s378 = sshll.u32 [#allocation10], 4
      %s379 = int_to_ptr.vmem [resolvable:$true] %s378
      %384 = dma.vmem_to_hbm [thread:$0]  %s379, 256, %s5, [#allocation4], 128, 128, 8
    $region41: #{tpu_custom_call.1} parent=1 // pred_fallthru
      _
    // Predicated region
    $region42: #{tpu_custom_call.1} parent=1 // pred_check
      _
    $region43: #{tpu_custom_call.1} parent=1 // pred_check_branch
      %386 = sbr.rel (0) target = $region45
    $region44: #{tpu_custom_call.1} parent=1 // pred_region
      %s388 = ssub.s32 256, 256
      %389 = vsyncadd [#allocation12], %s388
      %s390 = sshll.u32 [#allocation11], 4
      %s391 = int_to_ptr.vmem [resolvable:$true] %s390
      %396 = dma.vmem_to_hbm [thread:$0]  %s391, 256, %s6, [#allocation12], 128, 128, 8
    $region45: #{tpu_custom_call.1} parent=1 // pred_fallthru
      _
    // Predicated region
    $region46: #{tpu_custom_call.1} parent=1 // pred_check
      _
    $region47: #{tpu_custom_call.1} parent=1 // pred_check_branch
      %398 = sbr.rel (0) target = $region49
    $region48: #{tpu_custom_call.1} parent=1 // pred_region
      %s400 = ssub.s32 256, 256
      %401 = vsyncadd [#allocation12], %s400
      %s402 = sshll.u32 [#allocation13], 4
      %s403 = int_to_ptr.vmem [resolvable:$true] %s402
      %408 = dma.vmem_to_hbm [thread:$0]  %s403, 256, %s7, [#allocation12], 128, 128, 8
    $region49: #{tpu_custom_call.1} parent=1 // pred_fallthru
      _
    // Predicated region
    $region50: #{tpu_custom_call.1} parent=1 // pred_check
      _
    $region51: #{tpu_custom_call.1} parent=1 // pred_check_branch
      %410 = sbr.rel (0) target = $region53
    $region52: #{tpu_custom_call.1} parent=1 // pred_region
      %411 = dma.done [#allocation4], 256
    $region53: #{tpu_custom_call.1} parent=1 // pred_fallthru
      _
    // Predicated region
    $region54: #{tpu_custom_call.1} parent=1 // pred_check
      _
    $region55: #{tpu_custom_call.1} parent=1 // pred_check_branch
      %413 = sbr.rel (0) target = $region57
    $region56: #{tpu_custom_call.1} parent=1 // pred_region
      %414 = dma.done [#allocation12], 256
    $region57: #{tpu_custom_call.1} parent=1 // pred_fallthru
      _
    // Predicated region
    $region58: #{tpu_custom_call.1} parent=1 // pred_check
      _
    $region59: #{tpu_custom_call.1} parent=1 // pred_check_branch
      %416 = sbr.rel (0) target = $region61
    $region60: #{tpu_custom_call.1} parent=1 // pred_region
      %417 = dma.done [#allocation12], 256
    $region61: #{tpu_custom_call.1} parent=1 // pred_fallthru
      _
    %418 = vsyncpa [#allocation3], 1
    %419 = vsyncpa [#allocation6], 1
    %420 = vsyncpa [#allocation9], 1
    %421 = vsyncpa [#allocation4], 1
    %422 = vsyncpa [#allocation12], 1

</llo_original>
